<compile_context>
chip_gen: v5e
topology: v5e:2x2
jax: 0.10.0
libtpu: 0.0.40
codegen_flags: <defaults>
</compile_context>

<pallas_src>
import functools

import jax
import jax.numpy as jnp
from jax.experimental import pallas as pl
from jax.experimental.pallas import tpu as pltpu


# ---------------------------------------------------------------------------
# Fused BasicBlock kernel (one batch element per grid step)
# ---------------------------------------------------------------------------
def _basic_block_kernel(x_ref, mask_ref, w1t_ref, shift1_ref, w2t_ref, shift2_ref,
                        o_ref, *, W):
    # x_ref:      (C, M)     input, channels on sublanes / flattened spatial on lanes
    # mask_ref:   (9, M)     per-tap boundary masks (1 = in-bounds), compute dtype
    # w1t_ref:    (C, 9*C)   conv1 taps flattened (O, ky, kx, I), BN1 scale pre-folded
    # shift1_ref: (C, 1)     BN1 shift (f32)
    # w2t_ref:    (C, 9*C)   conv2 taps, BN2 scale pre-folded
    # shift2_ref: (C, 1)     BN2 shift (f32)
    # o_ref:      (C, M)     output (lane-dense store)
    cd = w1t_ref.dtype                         # compute dtype for MXU operands
    x_f32 = x_ref[...].astype(jnp.float32)     # single load: conv1 source + residual
    mask = mask_ref[...]                       # (9, M), resident

    def conv3x3_bn(act_cd, wt_ref, shift_ref):
        # Shift-and-mask im2col, fully lane-dense: tap (dy, dx) of output pixel m is
        # input pixel m + (dy-1)*W + (dx-1), cyclically rolled and zeroed where the
        # tap falls outside the image (the cyclic wrap is always masked).
        taps = []
        for t in range(9):
            dy, dx = divmod(t, 3)
            s = (dy - 1) * W + (dx - 1)
            shifted = act_cd if s == 0 else jnp.roll(act_cd, -s, axis=1)
            if t == 4:                         # center tap is never out of bounds
                taps.append(shifted)
            else:
                taps.append(shifted * mask[t:t + 1, :])
        col = jnp.concatenate(taps, axis=0)    # (9C, M), sublane-aligned pieces
        y = jnp.dot(wt_ref[...], col, preferred_element_type=jnp.float32)
        return y + shift_ref[...]              # f32 epilogue (shift broadcast on lanes)

    y1 = jnp.maximum(conv3x3_bn(x_f32.astype(cd), w1t_ref, shift1_ref), 0.0)
    y2 = conv3x3_bn(y1.astype(cd), w2t_ref, shift2_ref)
    o_ref[...] = jnp.maximum(y2 + x_f32, 0.0).astype(o_ref.dtype)


# ---------------------------------------------------------------------------
# BasicBlock wrapper (NCHW in / NCHW out, like the PyTorch module)
# ---------------------------------------------------------------------------
@functools.partial(jax.jit, static_argnames=("compute_dtype",))
def basic_block_forward(x_nchw, params, compute_dtype=jnp.bfloat16):
    N, C, H, W = x_nchw.shape
    M = H * W
    cd = compute_dtype

    # Fold eval-mode BN scale into the conv weights; OIHW -> (O, ky, kx, I) -> (C, 9C)
    # so each conv is a single matmul against the (9C, M) shift-and-mask im2col.
    def fold(w_oihw, scale):
        w = w_oihw * scale[:, None, None, None]
        return jnp.transpose(w, (0, 2, 3, 1)).reshape(C, 9 * C).astype(cd)

    w1t = fold(params["w1"], params["scale1"])
    w2t = fold(params["w2"], params["scale2"])
    shift1 = params["shift1"].reshape(C, 1).astype(jnp.float32)
    shift2 = params["shift2"].reshape(C, 1).astype(jnp.float32)

    # Per-tap boundary masks (shared by both convs, resident in VMEM).
    hh = jnp.arange(M, dtype=jnp.int32) // W
    ww = jnp.arange(M, dtype=jnp.int32) % W
    masks = []
    for t in range(9):
        dy, dx = divmod(t, 3)
        valid = ((hh + dy - 1 >= 0) & (hh + dy - 1 < H) &
                 (ww + dx - 1 >= 0) & (ww + dx - 1 < W))
        masks.append(valid)
    mask = jnp.stack(masks).astype(cd)                      # (9, M)

    # Lane-dense activation layout: (N, C, H*W) is a free reshape of NCHW.
    # x keeps its original dtype; the bf16 cast happens on the VPU in-kernel.
    xin = x_nchw.reshape(N, C, M)

    # VMEM budget: double-buffered x/out blocks + resident weights/masks + in-kernel
    # values (im2col operands, f32 intermediates), with generous headroom, clamped to
    # <= 48 MiB so it also fits v7x's 64 MiB physical VMEM.
    item = lambda d: jnp.dtype(d).itemsize
    blk = C * M * item(x_nchw.dtype)
    resident = (9 * M + 2 * 9 * C * C) * item(cd) + 2 * C * 4
    work = (2 * 9 * C + 8 * C) * M * 4
    vmem_bytes = int(min(max(4 * (4 * blk + resident + work), 4 << 20), 48 << 20))

    kernel = functools.partial(_basic_block_kernel, W=W)

    out = pl.pallas_call(
        kernel,
        out_shape=jax.ShapeDtypeStruct((N, C, M), x_nchw.dtype),
        grid_spec=pltpu.PrefetchScalarGridSpec(
            num_scalar_prefetch=0,
            grid=(N,),
            in_specs=[
                pl.BlockSpec((None, C, M), lambda n: (n, 0, 0)),   # x
                pl.BlockSpec((9, M), lambda n: (0, 0)),            # masks (resident)
                pl.BlockSpec((C, 9 * C), lambda n: (0, 0)),        # w1^T (resident)
                pl.BlockSpec((C, 1), lambda n: (0, 0)),            # shift1
                pl.BlockSpec((C, 9 * C), lambda n: (0, 0)),        # w2^T (resident)
                pl.BlockSpec((C, 1), lambda n: (0, 0)),            # shift2
            ],
            out_specs=pl.BlockSpec((None, C, M), lambda n: (n, 0, 0)),
        ),
        compiler_params=pltpu.CompilerParams(
            dimension_semantics=("parallel",),        # batch axis -> both TCs on v7x
            vmem_limit_bytes=vmem_bytes,
        ),
    )(xin, mask, w1t, shift1, w2t, shift2)

    return out.reshape(N, C, H, W)


# ---------------------------------------------------------------------------
# Deterministic params + pure-JAX (XLA) reference
# ---------------------------------------------------------------------------
def init_params(key, inplanes, planes, dtype=jnp.float32, eps=1e-5):
    assert inplanes == planes, "BasicBlock w/o downsample needs inplanes == planes"
    ks = jax.random.split(key, 10)
    w1 = 0.1 * jax.random.normal(ks[0], (planes, inplanes, 3, 3), dtype)   # OIHW
    w2 = 0.1 * jax.random.normal(ks[1], (planes, planes, 3, 3), dtype)

    def bn_fold(kg, kb, km, kv, c):
        gamma = 1.0 + 0.1 * jax.random.normal(kg, (c,), dtype)
        beta = 0.1 * jax.random.normal(kb, (c,), dtype)
        mean = 0.1 * jax.random.normal(km, (c,), dtype)
        var = jnp.abs(jax.random.normal(kv, (c,), dtype)) + 0.5
        scale = gamma / jnp.sqrt(var + eps)   # eval-mode BN fold
        shift = beta - mean * scale
        return scale, shift

    scale1, shift1 = bn_fold(ks[2], ks[3], ks[4], ks[5], planes)
    scale2, shift2 = bn_fold(ks[6], ks[7], ks[8], ks[9], planes)
    return {"w1": w1, "w2": w2,
            "scale1": scale1, "shift1": shift1,
            "scale2": scale2, "shift2": shift2}


def reference_forward(x_nchw, p):
    """Pure-JAX (XLA) reference replicating the PyTorch forward (eval-mode BN)."""
    conv = lambda a, w: jax.lax.conv_general_dilated(
        a, w, window_strides=(1, 1), padding="SAME",
        dimension_numbers=("NCHW", "OIHW", "NCHW"))
    b = lambda v: v[None, :, None, None]
    out = conv(x_nchw, p["w1"]) * b(p["scale1"]) + b(p["shift1"])
    out = jnp.maximum(out, 0.0)
    out = conv(out, p["w2"]) * b(p["scale2"]) + b(p["shift2"])
    return jnp.maximum(out + x_nchw, 0.0)


if __name__ == "__main__":
    key = jax.random.PRNGKey(0)
    kx, kp = jax.random.split(key)

    N, C, H, W = 2, 8, 16, 16          # inplanes == planes, stride=1, downsample=None
    x = jax.random.normal(kx, (N, C, H, W), jnp.float32)
    params = init_params(kp, inplanes=C, planes=C)

    ref = jax.block_until_ready(reference_forward(x, params))

    # f32 path: runs everywhere (including the CPU interpret harness).
    out = jax.block_until_ready(
        basic_block_forward(x, params, compute_dtype=jnp.float32))
    assert out.shape == (N, C, H, W)
    assert jnp.allclose(out, ref, rtol=2e-4, atol=2e-4), "f32 Pallas output mismatch"

    # Default bf16 MXU path (f32 accumulation + f32 residual/epilogue): only exercised
    # on a real TPU backend — XLA:CPU (used by the interpret harness) cannot execute
    # bf16 x bf16 -> f32 dots.
    if jax.default_backend() == "tpu":
        out_bf16 = jax.block_until_ready(basic_block_forward(x, params))
        assert jnp.allclose(out_bf16, ref, rtol=1e-1, atol=1e-1), \
            "bf16 Pallas output mismatch"

    print("KERNEL_OK")
</pallas_src>

<mosaic_0001>
module attributes {stable_mosaic.version = 11 : i64} {
  func.func @_basic_block_kernel(%arg0: i32, %arg1: memref<1x8x256xf32, #tpu.memory_space<vmem>>, %arg2: memref<9x256xf32, #tpu.memory_space<vmem>>, %arg3: memref<8x72xf32, #tpu.memory_space<vmem>>, %arg4: memref<8x1xf32, #tpu.memory_space<vmem>>, %arg5: memref<8x72xf32, #tpu.memory_space<vmem>>, %arg6: memref<8x1xf32, #tpu.memory_space<vmem>>, %arg7: memref<1x8x256xf32, #tpu.memory_space<vmem>>) attributes {dimension_semantics = [#tpu.dimension_semantics<parallel>], iteration_bounds = array<i64: 2>, scalar_prefetch = 0 : i64, scratch_operands = 0 : i64, tpu.core_type = #tpu.core_type<tc>, window_params = [{transform_indices = @transform_0, window_bounds = array<i64: 1, 8, 256>}, {pipeline_mode = #tpu.pipeline_mode<synchronous>, transform_indices = @transform_1, window_bounds = array<i64: 9, 256>}, {pipeline_mode = #tpu.pipeline_mode<synchronous>, transform_indices = @transform_2, window_bounds = array<i64: 8, 72>}, {pipeline_mode = #tpu.pipeline_mode<synchronous>, transform_indices = @transform_3, window_bounds = array<i64: 8, 1>}, {pipeline_mode = #tpu.pipeline_mode<synchronous>, transform_indices = @transform_4, window_bounds = array<i64: 8, 72>}, {pipeline_mode = #tpu.pipeline_mode<synchronous>, transform_indices = @transform_5, window_bounds = array<i64: 8, 1>}, {transform_indices = @transform_6, window_bounds = array<i64: 1, 8, 256>}]} {
    %c0 = arith.constant 0 : index
    %c0_0 = arith.constant 0 : index
    %c0_1 = arith.constant 0 : index
    %0 = vector.load %arg1[%c0, %c0_0, %c0_1] : memref<1x8x256xf32, #tpu.memory_space<vmem>>, vector<1x8x256xf32>
    %1 = vector.shape_cast %0 : vector<1x8x256xf32> to vector<8x256xf32>
    %c0_2 = arith.constant 0 : index
    %c0_3 = arith.constant 0 : index
    %2 = vector.load %arg2[%c0_2, %c0_3] : memref<9x256xf32, #tpu.memory_space<vmem>>, vector<9x256xf32>
    %3 = vector.extract_strided_slice %1 {offsets = [0, 239], sizes = [8, 17], strides = [1, 1]} : vector<8x256xf32> to vector<8x17xf32>
    %4 = vector.extract_strided_slice %1 {offsets = [0, 0], sizes = [8, 239], strides = [1, 1]} : vector<8x256xf32> to vector<8x239xf32>
    %5 = tpu.concatenate %3, %4 in 1 : vector<8x17xf32>, vector<8x239xf32> -> vector<8x256xf32>
    %6 = vector.extract_strided_slice %2 {offsets = [0, 0], sizes = [1, 256], strides = [1, 1]} : vector<9x256xf32> to vector<1x256xf32>
    %7 = vector.broadcast %6 : vector<1x256xf32> to vector<8x256xf32>
    %8 = arith.mulf %5, %7 : vector<8x256xf32>
    %9 = vector.extract_strided_slice %1 {offsets = [0, 240], sizes = [8, 16], strides = [1, 1]} : vector<8x256xf32> to vector<8x16xf32>
    %10 = vector.extract_strided_slice %1 {offsets = [0, 0], sizes = [8, 240], strides = [1, 1]} : vector<8x256xf32> to vector<8x240xf32>
    %11 = tpu.concatenate %9, %10 in 1 : vector<8x16xf32>, vector<8x240xf32> -> vector<8x256xf32>
    %12 = vector.extract_strided_slice %2 {offsets = [1, 0], sizes = [1, 256], strides = [1, 1]} : vector<9x256xf32> to vector<1x256xf32>
    %13 = vector.broadcast %12 : vector<1x256xf32> to vector<8x256xf32>
    %14 = arith.mulf %11, %13 : vector<8x256xf32>
    %15 = vector.extract_strided_slice %1 {offsets = [0, 241], sizes = [8, 15], strides = [1, 1]} : vector<8x256xf32> to vector<8x15xf32>
    %16 = vector.extract_strided_slice %1 {offsets = [0, 0], sizes = [8, 241], strides = [1, 1]} : vector<8x256xf32> to vector<8x241xf32>
    %17 = tpu.concatenate %15, %16 in 1 : vector<8x15xf32>, vector<8x241xf32> -> vector<8x256xf32>
    %18 = vector.extract_strided_slice %2 {offsets = [2, 0], sizes = [1, 256], strides = [1, 1]} : vector<9x256xf32> to vector<1x256xf32>
    %19 = vector.broadcast %18 : vector<1x256xf32> to vector<8x256xf32>
    %20 = arith.mulf %17, %19 : vector<8x256xf32>
    %21 = vector.extract_strided_slice %1 {offsets = [0, 255], sizes = [8, 1], strides = [1, 1]} : vector<8x256xf32> to vector<8x1xf32>
    %22 = vector.extract_strided_slice %1 {offsets = [0, 0], sizes = [8, 255], strides = [1, 1]} : vector<8x256xf32> to vector<8x255xf32>
    %23 = tpu.concatenate %21, %22 in 1 : vector<8x1xf32>, vector<8x255xf32> -> vector<8x256xf32>
    %24 = vector.extract_strided_slice %2 {offsets = [3, 0], sizes = [1, 256], strides = [1, 1]} : vector<9x256xf32> to vector<1x256xf32>
    %25 = vector.broadcast %24 : vector<1x256xf32> to vector<8x256xf32>
    %26 = arith.mulf %23, %25 : vector<8x256xf32>
    %27 = vector.extract_strided_slice %1 {offsets = [0, 1], sizes = [8, 255], strides = [1, 1]} : vector<8x256xf32> to vector<8x255xf32>
    %28 = vector.extract_strided_slice %1 {offsets = [0, 0], sizes = [8, 1], strides = [1, 1]} : vector<8x256xf32> to vector<8x1xf32>
    %29 = tpu.concatenate %27, %28 in 1 : vector<8x255xf32>, vector<8x1xf32> -> vector<8x256xf32>
    %30 = vector.extract_strided_slice %2 {offsets = [5, 0], sizes = [1, 256], strides = [1, 1]} : vector<9x256xf32> to vector<1x256xf32>
    %31 = vector.broadcast %30 : vector<1x256xf32> to vector<8x256xf32>
    %32 = arith.mulf %29, %31 : vector<8x256xf32>
    %33 = vector.extract_strided_slice %1 {offsets = [0, 15], sizes = [8, 241], strides = [1, 1]} : vector<8x256xf32> to vector<8x241xf32>
    %34 = vector.extract_strided_slice %1 {offsets = [0, 0], sizes = [8, 15], strides = [1, 1]} : vector<8x256xf32> to vector<8x15xf32>
    %35 = tpu.concatenate %33, %34 in 1 : vector<8x241xf32>, vector<8x15xf32> -> vector<8x256xf32>
    %36 = vector.extract_strided_slice %2 {offsets = [6, 0], sizes = [1, 256], strides = [1, 1]} : vector<9x256xf32> to vector<1x256xf32>
    %37 = vector.broadcast %36 : vector<1x256xf32> to vector<8x256xf32>
    %38 = arith.mulf %35, %37 : vector<8x256xf32>
    %39 = vector.extract_strided_slice %1 {offsets = [0, 16], sizes = [8, 240], strides = [1, 1]} : vector<8x256xf32> to vector<8x240xf32>
    %40 = vector.extract_strided_slice %1 {offsets = [0, 0], sizes = [8, 16], strides = [1, 1]} : vector<8x256xf32> to vector<8x16xf32>
    %41 = tpu.concatenate %39, %40 in 1 : vector<8x240xf32>, vector<8x16xf32> -> vector<8x256xf32>
    %42 = vector.extract_strided_slice %2 {offsets = [7, 0], sizes = [1, 256], strides = [1, 1]} : vector<9x256xf32> to vector<1x256xf32>
    %43 = vector.broadcast %42 : vector<1x256xf32> to vector<8x256xf32>
    %44 = arith.mulf %41, %43 : vector<8x256xf32>
    %45 = vector.extract_strided_slice %1 {offsets = [0, 17], sizes = [8, 239], strides = [1, 1]} : vector<8x256xf32> to vector<8x239xf32>
    %46 = vector.extract_strided_slice %1 {offsets = [0, 0], sizes = [8, 17], strides = [1, 1]} : vector<8x256xf32> to vector<8x17xf32>
    %47 = tpu.concatenate %45, %46 in 1 : vector<8x239xf32>, vector<8x17xf32> -> vector<8x256xf32>
    %48 = vector.extract_strided_slice %2 {offsets = [8, 0], sizes = [1, 256], strides = [1, 1]} : vector<9x256xf32> to vector<1x256xf32>
    %49 = vector.broadcast %48 : vector<1x256xf32> to vector<8x256xf32>
    %50 = arith.mulf %47, %49 : vector<8x256xf32>
    %51 = tpu.concatenate %8, %14, %20, %26, %1, %32, %38, %44, %50 in 0 : vector<8x256xf32>, vector<8x256xf32>, vector<8x256xf32>, vector<8x256xf32>, vector<8x256xf32>, vector<8x256xf32>, vector<8x256xf32>, vector<8x256xf32>, vector<8x256xf32> -> vector<72x256xf32>
    %c0_4 = arith.constant 0 : index
    %c0_5 = arith.constant 0 : index
    %52 = vector.load %arg3[%c0_4, %c0_5] : memref<8x72xf32, #tpu.memory_space<vmem>>, vector<8x72xf32>
    %cst = arith.constant dense<0.000000e+00> : vector<8x256xf32>
    %53 = tpu.matmul %52, %51, %cst {dimension_numbers = #tpu.dot_dimension_numbers<[1], [0], [0], [1], [0, 0, 1, 1], [], []>} : vector<8x72xf32>, vector<72x256xf32>, vector<8x256xf32> -> vector<8x256xf32>
    %c0_6 = arith.constant 0 : index
    %c0_7 = arith.constant 0 : index
    %54 = vector.load %arg4[%c0_6, %c0_7] : memref<8x1xf32, #tpu.memory_space<vmem>>, vector<8x1xf32>
    %55 = vector.broadcast %54 : vector<8x1xf32> to vector<8x256xf32>
    %56 = arith.addf %53, %55 : vector<8x256xf32>
    %cst_8 = arith.constant 0.000000e+00 : f32
    %57 = vector.broadcast %cst_8 : f32 to vector<8x256xf32>
    %58 = arith.maximumf %56, %57 : vector<8x256xf32>
    %59 = vector.extract_strided_slice %58 {offsets = [0, 239], sizes = [8, 17], strides = [1, 1]} : vector<8x256xf32> to vector<8x17xf32>
    %60 = vector.extract_strided_slice %58 {offsets = [0, 0], sizes = [8, 239], strides = [1, 1]} : vector<8x256xf32> to vector<8x239xf32>
    %61 = tpu.concatenate %59, %60 in 1 : vector<8x17xf32>, vector<8x239xf32> -> vector<8x256xf32>
    %62 = vector.extract_strided_slice %2 {offsets = [0, 0], sizes = [1, 256], strides = [1, 1]} : vector<9x256xf32> to vector<1x256xf32>
    %63 = vector.broadcast %62 : vector<1x256xf32> to vector<8x256xf32>
    %64 = arith.mulf %61, %63 : vector<8x256xf32>
    %65 = vector.extract_strided_slice %58 {offsets = [0, 240], sizes = [8, 16], strides = [1, 1]} : vector<8x256xf32> to vector<8x16xf32>
    %66 = vector.extract_strided_slice %58 {offsets = [0, 0], sizes = [8, 240], strides = [1, 1]} : vector<8x256xf32> to vector<8x240xf32>
    %67 = tpu.concatenate %65, %66 in 1 : vector<8x16xf32>, vector<8x240xf32> -> vector<8x256xf32>
    %68 = vector.extract_strided_slice %2 {offsets = [1, 0], sizes = [1, 256], strides = [1, 1]} : vector<9x256xf32> to vector<1x256xf32>
    %69 = vector.broadcast %68 : vector<1x256xf32> to vector<8x256xf32>
    %70 = arith.mulf %67, %69 : vector<8x256xf32>
    %71 = vector.extract_strided_slice %58 {offsets = [0, 241], sizes = [8, 15], strides = [1, 1]} : vector<8x256xf32> to vector<8x15xf32>
    %72 = vector.extract_strided_slice %58 {offsets = [0, 0], sizes = [8, 241], strides = [1, 1]} : vector<8x256xf32> to vector<8x241xf32>
    %73 = tpu.concatenate %71, %72 in 1 : vector<8x15xf32>, vector<8x241xf32> -> vector<8x256xf32>
    %74 = vector.extract_strided_slice %2 {offsets = [2, 0], sizes = [1, 256], strides = [1, 1]} : vector<9x256xf32> to vector<1x256xf32>
    %75 = vector.broadcast %74 : vector<1x256xf32> to vector<8x256xf32>
    %76 = arith.mulf %73, %75 : vector<8x256xf32>
    %77 = vector.extract_strided_slice %58 {offsets = [0, 255], sizes = [8, 1], strides = [1, 1]} : vector<8x256xf32> to vector<8x1xf32>
    %78 = vector.extract_strided_slice %58 {offsets = [0, 0], sizes = [8, 255], strides = [1, 1]} : vector<8x256xf32> to vector<8x255xf32>
    %79 = tpu.concatenate %77, %78 in 1 : vector<8x1xf32>, vector<8x255xf32> -> vector<8x256xf32>
    %80 = vector.extract_strided_slice %2 {offsets = [3, 0], sizes = [1, 256], strides = [1, 1]} : vector<9x256xf32> to vector<1x256xf32>
    %81 = vector.broadcast %80 : vector<1x256xf32> to vector<8x256xf32>
    %82 = arith.mulf %79, %81 : vector<8x256xf32>
    %83 = vector.extract_strided_slice %58 {offsets = [0, 1], sizes = [8, 255], strides = [1, 1]} : vector<8x256xf32> to vector<8x255xf32>
    %84 = vector.extract_strided_slice %58 {offsets = [0, 0], sizes = [8, 1], strides = [1, 1]} : vector<8x256xf32> to vector<8x1xf32>
    %85 = tpu.concatenate %83, %84 in 1 : vector<8x255xf32>, vector<8x1xf32> -> vector<8x256xf32>
    %86 = vector.extract_strided_slice %2 {offsets = [5, 0], sizes = [1, 256], strides = [1, 1]} : vector<9x256xf32> to vector<1x256xf32>
    %87 = vector.broadcast %86 : vector<1x256xf32> to vector<8x256xf32>
    %88 = arith.mulf %85, %87 : vector<8x256xf32>
    %89 = vector.extract_strided_slice %58 {offsets = [0, 15], sizes = [8, 241], strides = [1, 1]} : vector<8x256xf32> to vector<8x241xf32>
    %90 = vector.extract_strided_slice %58 {offsets = [0, 0], sizes = [8, 15], strides = [1, 1]} : vector<8x256xf32> to vector<8x15xf32>
    %91 = tpu.concatenate %89, %90 in 1 : vector<8x241xf32>, vector<8x15xf32> -> vector<8x256xf32>
    %92 = vector.extract_strided_slice %2 {offsets = [6, 0], sizes = [1, 256], strides = [1, 1]} : vector<9x256xf32> to vector<1x256xf32>
    %93 = vector.broadcast %92 : vector<1x256xf32> to vector<8x256xf32>
    %94 = arith.mulf %91, %93 : vector<8x256xf32>
    %95 = vector.extract_strided_slice %58 {offsets = [0, 16], sizes = [8, 240], strides = [1, 1]} : vector<8x256xf32> to vector<8x240xf32>
    %96 = vector.extract_strided_slice %58 {offsets = [0, 0], sizes = [8, 16], strides = [1, 1]} : vector<8x256xf32> to vector<8x16xf32>
    %97 = tpu.concatenate %95, %96 in 1 : vector<8x240xf32>, vector<8x16xf32> -> vector<8x256xf32>
    %98 = vector.extract_strided_slice %2 {offsets = [7, 0], sizes = [1, 256], strides = [1, 1]} : vector<9x256xf32> to vector<1x256xf32>
    %99 = vector.broadcast %98 : vector<1x256xf32> to vector<8x256xf32>
    %100 = arith.mulf %97, %99 : vector<8x256xf32>
    %101 = vector.extract_strided_slice %58 {offsets = [0, 17], sizes = [8, 239], strides = [1, 1]} : vector<8x256xf32> to vector<8x239xf32>
    %102 = vector.extract_strided_slice %58 {offsets = [0, 0], sizes = [8, 17], strides = [1, 1]} : vector<8x256xf32> to vector<8x17xf32>
    %103 = tpu.concatenate %101, %102 in 1 : vector<8x239xf32>, vector<8x17xf32> -> vector<8x256xf32>
    %104 = vector.extract_strided_slice %2 {offsets = [8, 0], sizes = [1, 256], strides = [1, 1]} : vector<9x256xf32> to vector<1x256xf32>
    %105 = vector.broadcast %104 : vector<1x256xf32> to vector<8x256xf32>
    %106 = arith.mulf %103, %105 : vector<8x256xf32>
    %107 = tpu.concatenate %64, %70, %76, %82, %58, %88, %94, %100, %106 in 0 : vector<8x256xf32>, vector<8x256xf32>, vector<8x256xf32>, vector<8x256xf32>, vector<8x256xf32>, vector<8x256xf32>, vector<8x256xf32>, vector<8x256xf32>, vector<8x256xf32> -> vector<72x256xf32>
    %c0_9 = arith.constant 0 : index
    %c0_10 = arith.constant 0 : index
    %108 = vector.load %arg5[%c0_9, %c0_10] : memref<8x72xf32, #tpu.memory_space<vmem>>, vector<8x72xf32>
    %cst_11 = arith.constant dense<0.000000e+00> : vector<8x256xf32>
    %109 = tpu.matmul %108, %107, %cst_11 {dimension_numbers = #tpu.dot_dimension_numbers<[1], [0], [0], [1], [0, 0, 1, 1], [], []>} : vector<8x72xf32>, vector<72x256xf32>, vector<8x256xf32> -> vector<8x256xf32>
    %c0_12 = arith.constant 0 : index
    %c0_13 = arith.constant 0 : index
    %110 = vector.load %arg6[%c0_12, %c0_13] : memref<8x1xf32, #tpu.memory_space<vmem>>, vector<8x1xf32>
    %111 = vector.broadcast %110 : vector<8x1xf32> to vector<8x256xf32>
    %112 = arith.addf %109, %111 : vector<8x256xf32>
    %113 = arith.addf %112, %1 : vector<8x256xf32>
    %cst_14 = arith.constant 0.000000e+00 : f32
    %114 = vector.broadcast %cst_14 : f32 to vector<8x256xf32>
    %115 = arith.maximumf %113, %114 : vector<8x256xf32>
    %c0_15 = arith.constant 0 : index
    %c0_16 = arith.constant 0 : index
    %c0_17 = arith.constant 0 : index
    %116 = vector.load %arg7[%c0_15, %c0_16, %c0_17] : memref<1x8x256xf32, #tpu.memory_space<vmem>>, vector<1x8x256xf32>
    %117 = vector.shape_cast %116 : vector<1x8x256xf32> to vector<8x256xf32>
    %118 = vector.shape_cast %115 : vector<8x256xf32> to vector<1x8x256xf32>
    tpu.vector_store %arg7[%c0_15, %c0_16, %c0_17], %118 {strides = array<i32>} : memref<1x8x256xf32, #tpu.memory_space<vmem>>, vector<1x8x256xf32>,
    return
  }
  func.func @transform_0(%arg0: i32) -> (i32, i32, i32) {
    %c0_i32 = arith.constant 0 : i32
    %c0_i32_0 = arith.constant 0 : i32
    %c0_i32_1 = arith.constant 0 : i32
    return %arg0, %c0_i32, %c0_i32_0 : i32, i32, i32
  }
  func.func @transform_1(%arg0: i32) -> (i32, i32) {
    %c0_i32 = arith.constant 0 : i32
    %c0_i32_0 = arith.constant 0 : i32
    %c0_i32_1 = arith.constant 0 : i32
    return %c0_i32, %c0_i32_0 : i32, i32
  }
  func.func @transform_2(%arg0: i32) -> (i32, i32) {
    %c0_i32 = arith.constant 0 : i32
    %c0_i32_0 = arith.constant 0 : i32
    %c0_i32_1 = arith.constant 0 : i32
    return %c0_i32, %c0_i32_0 : i32, i32
  }
  func.func @transform_3(%arg0: i32) -> (i32, i32) {
    %c0_i32 = arith.constant 0 : i32
    %c0_i32_0 = arith.constant 0 : i32
    %c0_i32_1 = arith.constant 0 : i32
    return %c0_i32, %c0_i32_0 : i32, i32
  }
  func.func @transform_4(%arg0: i32) -> (i32, i32) {
    %c0_i32 = arith.constant 0 : i32
    %c0_i32_0 = arith.constant 0 : i32
    %c0_i32_1 = arith.constant 0 : i32
    return %c0_i32, %c0_i32_0 : i32, i32
  }
  func.func @transform_5(%arg0: i32) -> (i32, i32) {
    %c0_i32 = arith.constant 0 : i32
    %c0_i32_0 = arith.constant 0 : i32
    %c0_i32_1 = arith.constant 0 : i32
    return %c0_i32, %c0_i32_0 : i32, i32
  }
  func.func @transform_6(%arg0: i32) -> (i32, i32, i32) {
    %c0_i32 = arith.constant 0 : i32
    %c0_i32_0 = arith.constant 0 : i32
    %c0_i32_1 = arith.constant 0 : i32
    return %arg0, %c0_i32, %c0_i32_0 : i32, i32, i32
  }
}

</mosaic_0001>

<llo_original>
// kernel: basic_block_forward.1
$region0: #{basic_block_forward.1}
  #allocation0 [shape = 'u32[]', space=smem, size = 0x4, offset = 0x4, fixed_abs, tag = 'smem constant byte address 0x4 - core index']
  #allocation1 [shape = 'u32[72,128]{1,0:T(1,128)}', space=vmem, size = 0x9000, scoped, tag = 'internal scratch']
  %s0 = inlined_call_operand.vmem [shape: f32[2,8,256], index: 0, kind: input, shape index: {}]
  %s1 = inlined_call_operand.vmem [shape: f32[9,256], index: 1, kind: input, shape index: {}]
  %s2 = inlined_call_operand.vmem [shape: f32[8,72], index: 2, kind: input, shape index: {}]
  %s3 = inlined_call_operand.vmem [shape: f32[8,1], index: 3, kind: input, shape index: {}]
  %s4 = inlined_call_operand.vmem [shape: f32[8,72], index: 4, kind: input, shape index: {}]
  %s5 = inlined_call_operand.vmem [shape: f32[8,1], index: 5, kind: input, shape index: {}]
  %s6 = inlined_call_operand.vmem [shape: f32[2,8,256], index: 6, kind: output, shape index: {}]
  %s7 = sld [smem:[#allocation0]]
  $region57: #{basic_block_forward.1} parent=0
    _
  %s9 = ssub.s32 1, %s7
  %s10 = scalar_select 0, %s9, %s7
  loop: start=0, step=1, limit=4
  $region2: #{basic_block_forward.1} parent=0 // loop_pre_header
    _
  $region3: #{basic_block_forward.1} parent=0 // loop_header
    %s12 = sphi 0, %s16
    %p13 = scmp.ge.s32.totalorder %s12, 4
    %s22 = sphi 0, %s24
    %s25 = sphi 0, %s22
    %s26 = sphi 0, %s25
    %s42 = sphi 0, %s26
    %s46 = sphi 0, %s46
    %s48 = sphi 0, %s46
    %s49 = sphi 0, %s48
    %s63 = sphi 0, %s49
    %s67 = sphi 0, %s67
    %s69 = sphi 0, %s67
    %s70 = sphi 0, %s69
    %s84 = sphi 0, %s70
    %s88 = sphi 0, %s88
    %s90 = sphi 0, %s88
    %s91 = sphi 0, %s90
    %s105 = sphi 0, %s91
    %s109 = sphi 0, %s109
    %s111 = sphi 0, %s109
    %s112 = sphi 0, %s111
    %s126 = sphi 0, %s112
    %s130 = sphi 0, %s130
    %s132 = sphi 0, %s130
    %s133 = sphi 0, %s132
    %s147 = sphi 0, %s133
    %s153 = sphi 0, %s155
    %s156 = sphi 0, %s153
    %s157 = sphi 0, %s156
    %s173 = sphi 0, %s157
  $region4: #{basic_block_forward.1} parent=0 // loop_header_branch
    %15 = sbr.rel (%p13) target = $region8
  $region5: #{basic_block_forward.1} parent=0 // loop_body
    %s17 = ssub.s32 %s12, 1
    %s18 = ssub.s32 %s12, 2
    %s19 = sadd.s32 %s12, 1
    %s20 = ssub.s32 %s12, %s19
    %p21 = scmp.eq.s32.totalorder %s20, 0
    %s23 = sadd.s32 %s22, 1
    %s24 = scalar_select %p21, %s22, %s23
    %p27 = pneg %p21
    %p28 = scmp.eq.s32.totalorder %s12, 1
    %p29 = por %p27, %p28
    %p30 = scmp.ne.s32.totalorder %s22, %s25
    %p31 = scmp.eq.s32.totalorder %s12, 0
    %p32 = por %p30, %p31
    %p33 = scmp.ne.s32.totalorder %s22, %s25
    %p34 = scmp.eq.s32.totalorder %s17, 1
    %p35 = por %p33, %p34
    %p36 = scmp.ne.s32.totalorder %s25, %s26
    %p37 = scmp.eq.s32.totalorder %s17, 0
    %p38 = por %p36, %p37
    %p39 = scmp.ne.s32.totalorder %s25, %s26
    %p40 = scmp.eq.s32.totalorder %s18, 1
    %p41 = por %p39, %p40
    %p43 = scmp.ne.s32.totalorder %s26, %s42
    %p44 = scmp.eq.s32.totalorder %s18, 0
    %p45 = por %p43, %p44
    %s47 = sadd.s32 %s46, 1
    %p50 = scmp.eq.s32.totalorder %s12, 1
    %p51 = scmp.ne.s32.totalorder %s46, %s48
    %p52 = scmp.eq.s32.totalorder %s12, 0
    %p53 = por %p51, %p52
    %p54 = scmp.ne.s32.totalorder %s46, %s48
    %p55 = scmp.eq.s32.totalorder %s17, 1
    %p56 = por %p54, %p55
    %p57 = scmp.ne.s32.totalorder %s48, %s49
    %p58 = scmp.eq.s32.totalorder %s17, 0
    %p59 = por %p57, %p58
    %p60 = scmp.ne.s32.totalorder %s48, %s49
    %p61 = scmp.eq.s32.totalorder %s18, 1
    %p62 = por %p60, %p61
    %p64 = scmp.ne.s32.totalorder %s49, %s63
    %p65 = scmp.eq.s32.totalorder %s18, 0
    %p66 = por %p64, %p65
    %s68 = sadd.s32 %s67, 1
    %p71 = scmp.eq.s32.totalorder %s12, 1
    %p72 = scmp.ne.s32.totalorder %s67, %s69
    %p73 = scmp.eq.s32.totalorder %s12, 0
    %p74 = por %p72, %p73
    %p75 = scmp.ne.s32.totalorder %s67, %s69
    %p76 = scmp.eq.s32.totalorder %s17, 1
    %p77 = por %p75, %p76
    %p78 = scmp.ne.s32.totalorder %s69, %s70
    %p79 = scmp.eq.s32.totalorder %s17, 0
    %p80 = por %p78, %p79
    %p81 = scmp.ne.s32.totalorder %s69, %s70
    %p82 = scmp.eq.s32.totalorder %s18, 1
    %p83 = por %p81, %p82
    %p85 = scmp.ne.s32.totalorder %s70, %s84
    %p86 = scmp.eq.s32.totalorder %s18, 0
    %p87 = por %p85, %p86
    %s89 = sadd.s32 %s88, 1
    %p92 = scmp.eq.s32.totalorder %s12, 1
    %p93 = scmp.ne.s32.totalorder %s88, %s90
    %p94 = scmp.eq.s32.totalorder %s12, 0
    %p95 = por %p93, %p94
    %p96 = scmp.ne.s32.totalorder %s88, %s90
    %p97 = scmp.eq.s32.totalorder %s17, 1
    %p98 = por %p96, %p97
    %p99 = scmp.ne.s32.totalorder %s90, %s91
    %p100 = scmp.eq.s32.totalorder %s17, 0
    %p101 = por %p99, %p100
    %p102 = scmp.ne.s32.totalorder %s90, %s91
    %p103 = scmp.eq.s32.totalorder %s18, 1
    %p104 = por %p102, %p103
    %p106 = scmp.ne.s32.totalorder %s91, %s105
    %p107 = scmp.eq.s32.totalorder %s18, 0
    %p108 = por %p106, %p107
    %s110 = sadd.s32 %s109, 1
    %p113 = scmp.eq.s32.totalorder %s12, 1
    %p114 = scmp.ne.s32.totalorder %s109, %s111
    %p115 = scmp.eq.s32.totalorder %s12, 0
    %p116 = por %p114, %p115
    %p117 = scmp.ne.s32.totalorder %s109, %s111
    %p118 = scmp.eq.s32.totalorder %s17, 1
    %p119 = por %p117, %p118
    %p120 = scmp.ne.s32.totalorder %s111, %s112
    %p121 = scmp.eq.s32.totalorder %s17, 0
    %p122 = por %p120, %p121
    %p123 = scmp.ne.s32.totalorder %s111, %s112
    %p124 = scmp.eq.s32.totalorder %s18, 1
    %p125 = por %p123, %p124
    %p127 = scmp.ne.s32.totalorder %s112, %s126
    %p128 = scmp.eq.s32.totalorder %s18, 0
    %p129 = por %p127, %p128
    %s131 = sadd.s32 %s130, 1
    %p134 = scmp.eq.s32.totalorder %s12, 1
    %p135 = scmp.ne.s32.totalorder %s130, %s132
    %p136 = scmp.eq.s32.totalorder %s12, 0
    %p137 = por %p135, %p136
    %p138 = scmp.ne.s32.totalorder %s130, %s132
    %p139 = scmp.eq.s32.totalorder %s17, 1
    %p140 = por %p138, %p139
    %p141 = scmp.ne.s32.totalorder %s132, %s133
    %p142 = scmp.eq.s32.totalorder %s17, 0
    %p143 = por %p141, %p142
    %p144 = scmp.ne.s32.totalorder %s132, %s133
    %p145 = scmp.eq.s32.totalorder %s18, 1
    %p146 = por %p144, %p145
    %p148 = scmp.ne.s32.totalorder %s133, %s147
    %p149 = scmp.eq.s32.totalorder %s18, 0
    %p150 = por %p148, %p149
    %s151 = ssub.s32 %s12, %s19
    %p152 = scmp.eq.s32.totalorder %s151, 0
    %s154 = sadd.s32 %s153, 1
    %s155 = scalar_select %p152, %s153, %s154
    %p158 = pneg %p152
    %p159 = scmp.eq.s32.totalorder %s12, 1
    %p160 = por %p158, %p159
    %p161 = scmp.ne.s32.totalorder %s153, %s156
    %p162 = scmp.eq.s32.totalorder %s12, 0
    %p163 = por %p161, %p162
    %p164 = scmp.ne.s32.totalorder %s153, %s156
    %p165 = scmp.eq.s32.totalorder %s17, 1
    %p166 = por %p164, %p165
    %p167 = scmp.ne.s32.totalorder %s156, %s157
    %p168 = scmp.eq.s32.totalorder %s17, 0
    %p169 = por %p167, %p168
    %p170 = scmp.ne.s32.totalorder %s156, %s157
    %p171 = scmp.eq.s32.totalorder %s18, 1
    %p172 = por %p170, %p171
    %p174 = scmp.ne.s32.totalorder %s157, %s173
    %p175 = scmp.eq.s32.totalorder %s18, 0
    %p176 = por %p174, %p175
    %p177 = scmp.le.s32.totalorder 1, %s12
    %p178 = scmp.lt.s32.totalorder %s12, 3
    %p179 = pnand %p177, %p178
    %p180 = pneg %p179
    // Predicated region
    $region9: #{basic_block_forward.1} parent=5 // pred_check
      _
    $region10: #{basic_block_forward.1} parent=5 // pred_check_branch
      %182 = sbr.rel (%p179) target = $region12
    $region11: #{basic_block_forward.1} parent=5 // pred_region
      %s183 = ssub.s32 %s12, 1
      // Predicated region
      $region13: #{basic_block_forward.1} parent=11 // pred_check
        %p184 = pneg %p59
      $region14: #{basic_block_forward.1} parent=11 // pred_check_branch
        %186 = sbr.rel (%p184) target = $region16
      $region15: #{basic_block_forward.1} parent=11 // pred_region
        _
      $region16: #{basic_block_forward.1} parent=11 // pred_fallthru
        _
      // Predicated region
      $region17: #{basic_block_forward.1} parent=11 // pred_check
        %p187 = pneg %p80
      $region18: #{basic_block_forward.1} parent=11 // pred_check_branch
        %189 = sbr.rel (%p187) target = $region20
      $region19: #{basic_block_forward.1} parent=11 // pred_region
        _
      $region20: #{basic_block_forward.1} parent=11 // pred_fallthru
        _
      // Predicated region
      $region21: #{basic_block_forward.1} parent=11 // pred_check
        %p190 = pneg %p101
      $region22: #{basic_block_forward.1} parent=11 // pred_check_branch
        %192 = sbr.rel (%p190) target = $region24
      $region23: #{basic_block_forward.1} parent=11 // pred_region
        _
      $region24: #{basic_block_forward.1} parent=11 // pred_fallthru
        _
      // Predicated region
      $region25: #{basic_block_forward.1} parent=11 // pred_check
        %p193 = pneg %p122
      $region26: #{basic_block_forward.1} parent=11 // pred_check_branch
        %195 = sbr.rel (%p193) target = $region28
      $region27: #{basic_block_forward.1} parent=11 // pred_region
        _
      $region28: #{basic_block_forward.1} parent=11 // pred_fallthru
        _
      // Predicated region
      $region29: #{basic_block_forward.1} parent=11 // pred_check
        %p196 = pneg %p143
      $region30: #{basic_block_forward.1} parent=11 // pred_check_branch
        %198 = sbr.rel (%p196) target = $region32
      $region31: #{basic_block_forward.1} parent=11 // pred_region
        _
      $region32: #{basic_block_forward.1} parent=11 // pred_fallthru
        _
    $region12: #{basic_block_forward.1} parent=5 // pred_fallthru
      _
    %p199 = scmp.lt.s32.totalorder %s12, 2
    // Predicated region
    $region33: #{basic_block_forward.1} parent=5 // pred_check
      %p200 = pneg %p199
    $region34: #{basic_block_forward.1} parent=5 // pred_check_branch
      %202 = sbr.rel (%p200) target = $region36
    $region35: #{basic_block_forward.1} parent=5 // pred_region
      // Predicated region
      $region37: #{basic_block_forward.1} parent=35 // pred_check
        %p203 = pneg %p32
      $region38: #{basic_block_forward.1} parent=35 // pred_check_branch
        %205 = sbr.rel (%p203) target = $region40
      $region39: #{basic_block_forward.1} parent=35 // pred_region
        %p206 = scmp.lt.s32.totalorder %s12, 1
        %s207 = scalar_select %p206, %s12, 1
        %s208 = smul.addr %s207, 2
        %s209 = smul.addr %s208, 8
        %s210 = scalar_lea.vmem %s0, %s209
      $region40: #{basic_block_forward.1} parent=35 // pred_fallthru
        _
    $region36: #{basic_block_forward.1} parent=5 // pred_fallthru
      _
    %p211 = scmp.le.s32.totalorder 1, %s12
    %p212 = scmp.lt.s32.totalorder %s12, 3
    %p213 = pnand %p211, %p212
    %p214 = pneg %p213
    // Predicated region
    $region41: #{basic_block_forward.1} parent=5 // pred_check
      _
    $region42: #{basic_block_forward.1} parent=5 // pred_check_branch
      %216 = sbr.rel (%p213) target = $region44
    $region43: #{basic_block_forward.1} parent=5 // pred_region
      %s217 = ssub.s32 %s12, 1
      %p218 = scmp.lt.s32.totalorder %s17, 1
      %s219 = scalar_select %p218, %s17, 1
      %s220 = smul.addr %s219, 2
      %s221 = smul.addr %s220, 8
      %s222 = scalar_lea.vmem %s0, %s221
      %p223 = pneg %p38
      %p224 = pneg %p35
      %p225 = pneg %p59
      %p226 = pneg %p56
      %p227 = pneg %p80
      %p228 = pneg %p77
      %p229 = pneg %p101
      %p230 = pneg %p98
      %p231 = pneg %p122
      %p232 = pneg %p119
      %p233 = pneg %p143
      %p234 = pneg %p140
      %p235 = pneg %p169
      %p236 = pneg %p166
      %p237 = scmp.lt.s32.totalorder %s17, 1
      %s238 = scalar_select %p237, %s17, 1
      %s239 = smul.addr %s238, 2
      %s240 = smul.addr %s239, 8
      %s241 = scalar_lea.vmem %s6, %s240
      %p242 = scmp.lt.s32.totalorder %s17, 1
      %s243 = scalar_select %p242, %s17, 1
      %s244 = smul.addr %s243, 2
      %s245 = smul.addr %s244, 8
      %s246 = scalar_lea.vmem %s0, %s245
      %p247 = scmp.lt.s32.totalorder %s17, 1
      %s248 = scalar_select %p247, %s17, 1
      %s249 = smul.addr %s248, 2
      %s250 = smul.addr %s249, 8
      %s251 = scalar_lea.vmem %s6, %s250
      %v252 = vld [vmem:[%s246] sm:$0xff]
      %v253 = vld [vmem:[%s246 + $0x8] sm:$0xff]
      %v254 = vld [vmem:[%s1] sm:$0xff]
      %v255 = vld [vmem:[%s1 + $0x8] sm:$0xff]
      %v256 = vld [vmem:[%s1 + $0x10] sm:$0x1]
      %v257 = vld [vmem:[%s1 + $0x18] sm:$0x1]
      %259 = vrot.lane.b32.xlu0 %v253, 17
      %v260 = vpop.permute.xlu0 %259
      %263 = vrot.lane.b32.xlu0 %v252, 17
      %v264 = vpop.permute.xlu0 %263
      %vm265 = vcmask 138240
      %v266 = vsel %vm265, %v264, %v260
      %v269 = vsel %vm265, %v260, %v264
      %v270 = vperm.slane %v254, 0
      %v271 = vperm.slane %v255, 0
      %v272 = vmul.f32 %v269, %v270
      %v273 = vmul.f32 %v266, %v271
      %274 = vrot.lane.b32.xlu0 %v253, 16
      %v275 = vpop.permute.xlu0 %274
      %277 = vrot.lane.b32.xlu0 %v252, 16
      %v278 = vpop.permute.xlu0 %277
      %vm279 = vcmask 130048
      %v280 = vsel %vm279, %v278, %v275
      %v283 = vsel %vm279, %v275, %v278
      %v284 = vperm.slane %v254, 1
      %v285 = vperm.slane %v255, 1
      %v286 = vmul.f32 %v283, %v284
      %v287 = vmul.f32 %v280, %v285
      %288 = vrot.lane.b32.xlu0 %v253, 15
      %v289 = vpop.permute.xlu0 %288
      %291 = vrot.lane.b32.xlu0 %v252, 15
      %v292 = vpop.permute.xlu0 %291
      %vm293 = vcmask 121856
      %v294 = vsel %vm293, %v292, %v289
      %v297 = vsel %vm293, %v289, %v292
      %v298 = vperm.slane %v254, 2
      %v299 = vperm.slane %v255, 2
      %v300 = vmul.f32 %v297, %v298
      %v301 = vmul.f32 %v294, %v299
      %302 = vrot.lane.b32.xlu0 %v253, 1
      %v303 = vpop.permute.xlu0 %302
      %305 = vrot.lane.b32.xlu0 %v252, 1
      %v306 = vpop.permute.xlu0 %305
      %vm307 = vcmask 7168
      %v308 = vsel %vm307, %v306, %v303
      %v311 = vsel %vm307, %v303, %v306
      %v312 = vperm.slane %v254, 3
      %v313 = vperm.slane %v255, 3
      %v314 = vmul.f32 %v311, %v312
      %v315 = vmul.f32 %v308, %v313
      %316 = vrot.lane.b32.xlu0 %v252, 127
      %v317 = vpop.permute.xlu0 %316
      %318 = vrot.lane.b32.xlu0 %v253, 127
      %v319 = vpop.permute.xlu0 %318
      %vm320 = vcmask 1039360
      %v321 = vsel %vm320, %v317, %v319
      %v325 = vsel %vm320, %v319, %v317
      %v326 = vperm.slane %v254, 5
      %v327 = vperm.slane %v255, 5
      %v328 = vmul.f32 %v321, %v326
      %v329 = vmul.f32 %v325, %v327
      %330 = vrot.lane.b32.xlu0 %v252, 113
      %v331 = vpop.permute.xlu0 %330
      %332 = vrot.lane.b32.xlu0 %v253, 113
      %v333 = vpop.permute.xlu0 %332
      %vm334 = vcmask 924672
      %v335 = vsel %vm334, %v331, %v333
      %v339 = vsel %vm334, %v333, %v331
      %v340 = vperm.slane %v254, 6
      %v341 = vperm.slane %v255, 6
      %v342 = vmul.f32 %v335, %v340
      %v343 = vmul.f32 %v339, %v341
      %344 = vrot.lane.b32.xlu0 %v252, 112
      %v345 = vpop.permute.xlu0 %344
      %346 = vrot.lane.b32.xlu0 %v253, 112
      %v347 = vpop.permute.xlu0 %346
      %vm348 = vcmask 916480
      %v349 = vsel %vm348, %v345, %v347
      %v353 = vsel %vm348, %v347, %v345
      %v354 = vperm.slane %v254, 7
      %v355 = vperm.slane %v255, 7
      %v356 = vmul.f32 %v349, %v354
      %v357 = vmul.f32 %v353, %v355
      %358 = vrot.lane.b32.xlu0 %v252, 111
      %v359 = vpop.permute.xlu0 %358
      %360 = vrot.lane.b32.xlu0 %v253, 111
      %v361 = vpop.permute.xlu0 %360
      %vm362 = vcmask 908288
      %v363 = vsel %vm362, %v359, %v361
      %v367 = vsel %vm362, %v361, %v359
      %v368 = vperm.slane %v256, 0
      %v369 = vperm.slane %v257, 0
      %v370 = vmul.f32 %v363, %v368
      %v371 = vmul.f32 %v367, %v369
      %v372 = vld [vmem:[%s2] sm:$0xff]
      %v373 = vld [vmem:[%s3] sm:$0xff]
      %375 = vset.pattern.permute.xlu0 0
      %376 = vperm.xlu0 %375, %v373
      %v377 = vpop.permute.xlu0 %376
      %vm379 = vcmask 588800
      %v381 = vsel %vm379, %v372, 0
      %383 = vmatpush.msra.mxu0 0.0
      %384 = vmatpush.msra.mxu0 0.0
      %385 = vmatpush.msra.mxu0 0.0
      %386 = vmatpush.msra.mxu0 0.0
      %387 = vmatpush.msra.mxu0 0.0
      %388 = vmatpush.msra.mxu0 0.0
      %389 = vmatpush.msra.mxu0 0.0
      %390 = vmatpush.msra.mxu0 %v370
      %391 = vmatpush.msra.mxu0 %v356
      %392 = vmatpush.msra.mxu0 %v342
      %393 = vmatpush.msra.mxu0 %v328
      %394 = vmatpush.msra.mxu0 %v252
      %395 = vmatpush.msra.mxu0 %v314
      %396 = vmatpush.msra.mxu0 %v300
      %397 = vmatpush.msra.mxu0 %v286
      %398 = vmatpush.msra.mxu0 %v272
      %399 = vmatmul.f32.gmra.mxu0 %v381
      %v400 = vpop.f32.mrf.mxu0
      %v401 = vadd.f32 %v377, %v400
      %402 = vdwg.mxu0
      %403 = vmatpush.msra.mxu0 0.0
      %404 = vmatpush.msra.mxu0 0.0
      %405 = vmatpush.msra.mxu0 0.0
      %406 = vmatpush.msra.mxu0 0.0
      %407 = vmatpush.msra.mxu0 0.0
      %408 = vmatpush.msra.mxu0 0.0
      %409 = vmatpush.msra.mxu0 0.0
      %410 = vmatpush.msra.mxu0 %v371
      %411 = vmatpush.msra.mxu0 %v357
      %412 = vmatpush.msra.mxu0 %v343
      %413 = vmatpush.msra.mxu0 %v329
      %414 = vmatpush.msra.mxu0 %v253
      %415 = vmatpush.msra.mxu0 %v315
      %416 = vmatpush.msra.mxu0 %v301
      %417 = vmatpush.msra.mxu0 %v287
      %418 = vmatpush.msra.mxu0 %v273
      %419 = vmatmul.f32.gmra.mxu0 %v381
      %v420 = vpop.f32.mrf.mxu0
      %v421 = vadd.f32 %v377, %v420
      %422 = vdwg.mxu0
      %v423 = vmax.f32 %v401, 0.0
      %v424 = vmax.f32 %v421, 0.0
      %426 = vrot.lane.b32.xlu0 %v424, 17
      %v427 = vpop.permute.xlu0 %426
      %430 = vrot.lane.b32.xlu0 %v423, 17
      %v431 = vpop.permute.xlu0 %430
      %v432 = vsel %vm265, %v431, %v427
      %v435 = vsel %vm265, %v427, %v431
      %v436 = vmul.f32 %v435, %v270
      %v437 = vmul.f32 %v432, %v271
      %438 = vrot.lane.b32.xlu0 %v424, 16
      %v439 = vpop.permute.xlu0 %438
      %441 = vrot.lane.b32.xlu0 %v423, 16
      %v442 = vpop.permute.xlu0 %441
      %v443 = vsel %vm279, %v442, %v439
      %v446 = vsel %vm279, %v439, %v442
      %v447 = vmul.f32 %v446, %v284
      %v448 = vmul.f32 %v443, %v285
      %449 = vrot.lane.b32.xlu0 %v424, 15
      %v450 = vpop.permute.xlu0 %449
      %452 = vrot.lane.b32.xlu0 %v423, 15
      %v453 = vpop.permute.xlu0 %452
      %v454 = vsel %vm293, %v453, %v450
      %v457 = vsel %vm293, %v450, %v453
      %v458 = vmul.f32 %v457, %v298
      %v459 = vmul.f32 %v454, %v299
      %460 = vrot.lane.b32.xlu0 %v424, 1
      %v461 = vpop.permute.xlu0 %460
      %463 = vrot.lane.b32.xlu0 %v423, 1
      %v464 = vpop.permute.xlu0 %463
      %v465 = vsel %vm307, %v464, %v461
      %v468 = vsel %vm307, %v461, %v464
      %v469 = vmul.f32 %v468, %v312
      %v470 = vmul.f32 %v465, %v313
      %471 = vrot.lane.b32.xlu0 %v423, 127
      %v472 = vpop.permute.xlu0 %471
      %473 = vrot.lane.b32.xlu0 %v424, 127
      %v474 = vpop.permute.xlu0 %473
      %v475 = vsel %vm320, %v472, %v474
      %v479 = vsel %vm320, %v474, %v472
      %v480 = vmul.f32 %v475, %v326
      %v481 = vmul.f32 %v479, %v327
      %482 = vrot.lane.b32.xlu0 %v423, 113
      %v483 = vpop.permute.xlu0 %482
      %484 = vrot.lane.b32.xlu0 %v424, 113
      %v485 = vpop.permute.xlu0 %484
      %v486 = vsel %vm334, %v483, %v485
      %v490 = vsel %vm334, %v485, %v483
      %v491 = vmul.f32 %v486, %v340
      %v492 = vmul.f32 %v490, %v341
      %493 = vrot.lane.b32.xlu0 %v423, 112
      %v494 = vpop.permute.xlu0 %493
      %495 = vrot.lane.b32.xlu0 %v424, 112
      %v496 = vpop.permute.xlu0 %495
      %v497 = vsel %vm348, %v494, %v496
      %v501 = vsel %vm348, %v496, %v494
      %v502 = vmul.f32 %v497, %v354
      %v503 = vmul.f32 %v501, %v355
      %504 = vrot.lane.b32.xlu0 %v423, 111
      %v505 = vpop.permute.xlu0 %504
      %506 = vrot.lane.b32.xlu0 %v424, 111
      %v507 = vpop.permute.xlu0 %506
      %v508 = vsel %vm362, %v505, %v507
      %v512 = vsel %vm362, %v507, %v505
      %v513 = vmul.f32 %v508, %v368
      %v514 = vmul.f32 %v512, %v369
      %v515 = vld [vmem:[%s4] sm:$0xff]
      %v516 = vld [vmem:[%s5] sm:$0xff]
      %518 = vset.pattern.permute.xlu0 0
      %519 = vperm.xlu0 %518, %v516
      %v520 = vpop.permute.xlu0 %519
      %v523 = vsel %vm379, %v515, 0
      %525 = vmatpush.msra.mxu0 0.0
      %526 = vmatpush.msra.mxu0 0.0
      %527 = vmatpush.msra.mxu0 0.0
      %528 = vmatpush.msra.mxu0 0.0
      %529 = vmatpush.msra.mxu0 0.0
      %530 = vmatpush.msra.mxu0 0.0
      %531 = vmatpush.msra.mxu0 0.0
      %532 = vmatpush.msra.mxu0 %v513
      %533 = vmatpush.msra.mxu0 %v502
      %534 = vmatpush.msra.mxu0 %v491
      %535 = vmatpush.msra.mxu0 %v480
      %536 = vmatpush.msra.mxu0 %v423
      %537 = vmatpush.msra.mxu0 %v469
      %538 = vmatpush.msra.mxu0 %v458
      %539 = vmatpush.msra.mxu0 %v447
      %540 = vmatpush.msra.mxu0 %v436
      %541 = vmatmul.f32.gmra.mxu0 %v523
      %v542 = vpop.f32.mrf.mxu0
      %v543 = vadd.f32 %v520, %v542
      %544 = vdwg.mxu0
      %545 = vmatpush.msra.mxu0 0.0
      %546 = vmatpush.msra.mxu0 0.0
      %547 = vmatpush.msra.mxu0 0.0
      %548 = vmatpush.msra.mxu0 0.0
      %549 = vmatpush.msra.mxu0 0.0
      %550 = vmatpush.msra.mxu0 0.0
      %551 = vmatpush.msra.mxu0 0.0
      %552 = vmatpush.msra.mxu0 %v514
      %553 = vmatpush.msra.mxu0 %v503
      %554 = vmatpush.msra.mxu0 %v492
      %555 = vmatpush.msra.mxu0 %v481
      %556 = vmatpush.msra.mxu0 %v424
      %557 = vmatpush.msra.mxu0 %v470
      %558 = vmatpush.msra.mxu0 %v459
      %559 = vmatpush.msra.mxu0 %v448
      %560 = vmatpush.msra.mxu0 %v437
      %561 = vmatmul.f32.gmra.mxu0 %v523
      %v562 = vpop.f32.mrf.mxu0
      %v563 = vadd.f32 %v520, %v562
      %564 = vdwg.mxu0
      %v565 = vadd.f32 %v543, %v252
      %v566 = vadd.f32 %v563, %v253
      %v567 = vmax.f32 %v565, 0.0
      %v568 = vmax.f32 %v566, 0.0
      %569 = vst [vmem:[%s251] sm:$0xff] %v567
      %570 = vst [vmem:[%s251 + $0x8] sm:$0xff] %v568
      %p571 = scmp.lt.s32.totalorder %s17, 1
      %s572 = scalar_select %p571, %s17, 1
      %s573 = smul.addr %s572, 2
      %s574 = smul.addr %s573, 8
      %s575 = scalar_lea.vmem %s6, %s574
      // Predicated region
      $region45: #{basic_block_forward.1} parent=43 // pred_check
        %p576 = pneg %p166
      $region46: #{basic_block_forward.1} parent=43 // pred_check_branch
        %578 = sbr.rel (%p576) target = $region48
      $region47: #{basic_block_forward.1} parent=43 // pred_region
        _
      $region48: #{basic_block_forward.1} parent=43 // pred_fallthru
        _
    $region44: #{basic_block_forward.1} parent=5 // pred_fallthru
      _
    %p579 = scmp.le.s32.totalorder 2, %s12
    // Predicated region
    $region49: #{basic_block_forward.1} parent=5 // pred_check
      %p580 = pneg %p579
    $region50: #{basic_block_forward.1} parent=5 // pred_check_branch
      %582 = sbr.rel (%p580) target = $region52
    $region51: #{basic_block_forward.1} parent=5 // pred_region
      %s583 = ssub.s32 %s12, 2
      // Predicated region
      $region53: #{basic_block_forward.1} parent=51 // pred_check
        %p584 = pneg %p172
      $region54: #{basic_block_forward.1} parent=51 // pred_check_branch
        %586 = sbr.rel (%p584) target = $region56
      $region55: #{basic_block_forward.1} parent=51 // pred_region
        %p587 = scmp.lt.s32.totalorder %s18, 1
        %s588 = scalar_select %p587, %s18, 1
        %s589 = smul.addr %s588, 2
        %s590 = smul.addr %s589, 8
        %s591 = scalar_lea.vmem %s6, %s590
      $region56: #{basic_block_forward.1} parent=51 // pred_fallthru
        _
    $region52: #{basic_block_forward.1} parent=5 // pred_fallthru
      _
  $region6: #{basic_block_forward.1} parent=0 // loop_footer
    %s16 = sadd.s32 1, %s12
  $region7: #{basic_block_forward.1} parent=0 // loop_footer_branch
    %11 = sbr.rel target = $region3
  $region8: #{basic_block_forward.1} parent=0 // loop_exit
    _

</llo_original>
